<compile_context>
chip_gen: v6e
topology: v6e:2x2x1
jax: 0.10.0
libtpu: 0.0.40
codegen_flags: <defaults>
</compile_context>

<pallas_src>
import jax
import jax.numpy as jnp
from jax import lax
from jax.experimental import pallas as pl
from jax.experimental.pallas import tpu as pltpu


TB = 512  # batch tile width (lanes of output per grid step)


def darec_kernel(uids_ref, iids_ref,          # (1, TB) int32, batch on lanes
                 u_scores_ref, i_scores_ref,  # (1, Nu) / (1, Ni) f32, resident
                 b_ref,                       # (1, 1) f32 bias in SMEM
                 out_ref):                    # (1, TB) f32, lane-dense
    nu = u_scores_ref.shape[1]
    ni = i_scores_ref.shape[1]
    tb = out_ref.shape[1]

    # One-hot gather masks (N, TB): batch stays on lanes, so the (1, TB) id
    # vectors broadcast across sublanes with no relayout.  Exact in f32.
    u_onehot = (lax.broadcasted_iota(jnp.int32, (nu, tb), 0)
                == uids_ref[...]).astype(jnp.float32)
    i_onehot = (lax.broadcasted_iota(jnp.int32, (ni, tb), 0)
                == iids_ref[...]).astype(jnp.float32)

    # Gather the precomputed per-row scores via the MXU:
    # (1, N) @ (N, TB) -> (1, TB).  The D dimension was already contracted
    # against the fc weight in the wrapper, so this is the whole forward.
    acc = jnp.dot(u_scores_ref[...], u_onehot,
                  preferred_element_type=jnp.float32)
    acc = acc + jnp.dot(i_scores_ref[...], i_onehot,
                        preferred_element_type=jnp.float32)
    out_ref[...] = acc + b_ref[0, 0]


def darec_forward(user_ids, item_ids, user_tbl, item_tbl, fc_w, fc_b, *, tb=TB):
    """user_ids/item_ids: (B,) int32. Returns (B,) float32."""
    B = user_ids.shape[0]
    nu, D = user_tbl.shape
    ni = item_tbl.shape[0]

    b_pad = pl.cdiv(B, tb) * tb
    n_tiles = b_pad // tb
    pad = b_pad - B

    # Pad ids to a multiple of TB (padded lanes gather row 0; sliced off at
    # the end) and lay the batch out along the lane axis.
    uids = jnp.pad(user_ids.astype(jnp.int32), (0, pad)).reshape(1, b_pad)
    iids = jnp.pad(item_ids.astype(jnp.int32), (0, pad)).reshape(1, b_pad)

    # Algebraic precompute (done once, outside the grid): collapse the D
    # dimension into per-row scores.  These replace the (D, N) tables and
    # (D, 1) weight halves that the previous kernel kept resident.
    u_scores = (user_tbl @ fc_w[0, :D]).reshape(1, nu)   # (1, Nu) f32
    i_scores = (item_tbl @ fc_w[0, D:]).reshape(1, ni)   # (1, Ni) f32

    # Advisory cost hint: one (1,N)@(N,TB) MAC pass per table per tile.
    cost = pl.CostEstimate(
        flops=2 * (nu + ni) * b_pad,
        transcendentals=0,
        bytes_accessed=(2 * b_pad * 4     # id slabs
                        + (nu + ni) * 4   # resident score rows
                        + 4               # bias
                        + b_pad * 4))     # output

    out = pl.pallas_call(
        darec_kernel,
        out_shape=jax.ShapeDtypeStruct((1, b_pad), jnp.float32),
        grid=(n_tiles,),
        in_specs=[
            pl.BlockSpec((1, tb), lambda i: (0, i)),      # user id tile
            pl.BlockSpec((1, tb), lambda i: (0, i)),      # item id tile
            pl.BlockSpec((1, nu), lambda i: (0, 0)),      # resident user scores
            pl.BlockSpec((1, ni), lambda i: (0, 0)),      # resident item scores
            pl.BlockSpec(memory_space=pltpu.MemorySpace.SMEM),  # bias scalar
        ],
        out_specs=pl.BlockSpec((1, tb), lambda i: (0, i)),
        compiler_params=pltpu.CompilerParams(
            dimension_semantics=("parallel",)),
        cost_estimate=cost,
    )(uids, iids, u_scores, i_scores, fc_b)

    return out.reshape(b_pad)[:B]           # .squeeze()


def make_params(key, num_users, num_items, embedding_dim):
    """Deterministic synthetic parameters matching DARec.__init__ shapes."""
    k_u, k_i, k_w, k_b = jax.random.split(key, 4)
    # nn.Embedding default init: N(0, 1)
    user_tbl = jax.random.normal(k_u, (num_users, embedding_dim), jnp.float32)
    item_tbl = jax.random.normal(k_i, (num_items, embedding_dim), jnp.float32)
    # nn.Linear(2D, 1) default init: U(-1/sqrt(2D), 1/sqrt(2D))
    bound = 1.0 / jnp.sqrt(2.0 * embedding_dim)
    fc_w = jax.random.uniform(k_w, (1, 2 * embedding_dim), jnp.float32,
                              -bound, bound)
    fc_b = jax.random.uniform(k_b, (1, 1), jnp.float32, -bound, bound)
    return user_tbl, item_tbl, fc_w, fc_b


def reference_forward(user_ids, item_ids, user_tbl, item_tbl, fc_w, fc_b):
    u = user_tbl[user_ids]                       # (B, D)
    it = item_tbl[item_ids]                      # (B, D)
    combined = jnp.concatenate([u, it], axis=1)  # (B, 2D)
    return (combined @ fc_w.T + fc_b[0]).squeeze(-1)


if __name__ == "__main__":
    num_users, num_items, embedding_dim, batch = 64, 128, 32, 8

    key = jax.random.PRNGKey(0)
    k_params, k_uid, k_iid = jax.random.split(key, 3)
    user_tbl, item_tbl, fc_w, fc_b = make_params(
        k_params, num_users, num_items, embedding_dim)

    user_ids = jax.random.randint(k_uid, (batch,), 0, num_users, jnp.int32)
    item_ids = jax.random.randint(k_iid, (batch,), 0, num_items, jnp.int32)

    out = darec_forward(user_ids, item_ids, user_tbl, item_tbl, fc_w, fc_b)
    out = jax.block_until_ready(out)

    ref = reference_forward(user_ids, item_ids, user_tbl, item_tbl, fc_w, fc_b)
    assert out.shape == (batch,)
    assert jnp.allclose(out, ref, atol=1e-5, rtol=1e-5)

    print("KERNEL_OK")
</pallas_src>

<mosaic_0001>
module attributes {stable_mosaic.version = 11 : i64} {
  func.func @darec_kernel(%arg0: i32, %arg1: memref<1x512xi32, #tpu.memory_space<vmem>>, %arg2: memref<1x512xi32, #tpu.memory_space<vmem>>, %arg3: memref<1x64xf32, #tpu.memory_space<vmem>>, %arg4: memref<1x128xf32, #tpu.memory_space<vmem>>, %arg5: memref<1x1xf32, #tpu.memory_space<smem>>, %arg6: memref<1x512xf32, #tpu.memory_space<vmem>>) attributes {dimension_semantics = [#tpu.dimension_semantics<parallel>], iteration_bounds = array<i64: 1>, scalar_prefetch = 0 : i64, scratch_operands = 0 : i64, tpu.core_type = #tpu.core_type<tc>, window_params = [{transform_indices = @transform_0, window_bounds = array<i64: 1, 512>}, {transform_indices = @transform_1, window_bounds = array<i64: 1, 512>}, {pipeline_mode = #tpu.pipeline_mode<synchronous>, transform_indices = @transform_2, window_bounds = array<i64: 1, 64>}, {pipeline_mode = #tpu.pipeline_mode<synchronous>, transform_indices = @transform_3, window_bounds = array<i64: 1, 128>}, {transform_indices = @transform_4, window_bounds = array<i64: 1, 1>}, {transform_indices = @transform_5, window_bounds = array<i64: 1, 512>}]} {
    %0 = tpu.iota {dimensions = array<i32: 0>} : vector<64x512xi32>
    %c0 = arith.constant 0 : index
    %c0_0 = arith.constant 0 : index
    %1 = vector.load %arg1[%c0, %c0_0] : memref<1x512xi32, #tpu.memory_space<vmem>>, vector<1x512xi32>
    %2 = vector.broadcast %1 : vector<1x512xi32> to vector<64x512xi32>
    %3 = arith.cmpi eq, %0, %2 : vector<64x512xi32>
    %4 = arith.extui %3 : vector<64x512xi1> to vector<64x512xi32>
    %5 = arith.sitofp %4 : vector<64x512xi32> to vector<64x512xf32>
    %6 = tpu.iota {dimensions = array<i32: 0>} : vector<128x512xi32>
    %c0_1 = arith.constant 0 : index
    %c0_2 = arith.constant 0 : index
    %7 = vector.load %arg2[%c0_1, %c0_2] : memref<1x512xi32, #tpu.memory_space<vmem>>, vector<1x512xi32>
    %8 = vector.broadcast %7 : vector<1x512xi32> to vector<128x512xi32>
    %9 = arith.cmpi eq, %6, %8 : vector<128x512xi32>
    %10 = arith.extui %9 : vector<128x512xi1> to vector<128x512xi32>
    %11 = arith.sitofp %10 : vector<128x512xi32> to vector<128x512xf32>
    %c0_3 = arith.constant 0 : index
    %c0_4 = arith.constant 0 : index
    %12 = vector.load %arg3[%c0_3, %c0_4] : memref<1x64xf32, #tpu.memory_space<vmem>>, vector<1x64xf32>
    %cst = arith.constant dense<0.000000e+00> : vector<1x512xf32>
    %13 = tpu.matmul %12, %5, %cst {dimension_numbers = #tpu.dot_dimension_numbers<[1], [0], [0], [1], [0, 0, 1, 1], [], []>} : vector<1x64xf32>, vector<64x512xf32>, vector<1x512xf32> -> vector<1x512xf32>
    %c0_5 = arith.constant 0 : index
    %c0_6 = arith.constant 0 : index
    %14 = vector.load %arg4[%c0_5, %c0_6] : memref<1x128xf32, #tpu.memory_space<vmem>>, vector<1x128xf32>
    %cst_7 = arith.constant dense<0.000000e+00> : vector<1x512xf32>
    %15 = tpu.matmul %14, %11, %cst_7 {dimension_numbers = #tpu.dot_dimension_numbers<[1], [0], [0], [1], [0, 0, 1, 1], [], []>} : vector<1x128xf32>, vector<128x512xf32>, vector<1x512xf32> -> vector<1x512xf32>
    %16 = arith.addf %13, %15 : vector<1x512xf32>
    %c0_8 = arith.constant 0 : index
    %c0_9 = arith.constant 0 : index
    %17 = memref.load %arg5[%c0_8, %c0_9] : memref<1x1xf32, #tpu.memory_space<smem>>
    %18 = vector.broadcast %17 : f32 to vector<1x512xf32>
    %19 = arith.addf %16, %18 : vector<1x512xf32>
    %c0_10 = arith.constant 0 : index
    %c0_11 = arith.constant 0 : index
    %20 = vector.load %arg6[%c0_10, %c0_11] : memref<1x512xf32, #tpu.memory_space<vmem>>, vector<1x512xf32>
    tpu.vector_store %arg6[%c0_10, %c0_11], %19 {strides = array<i32>} : memref<1x512xf32, #tpu.memory_space<vmem>>, vector<1x512xf32>,
    return
  }
  func.func @transform_0(%arg0: i32) -> (i32, i32) {
    %c0_i32 = arith.constant 0 : i32
    %c0_i32_0 = arith.constant 0 : i32
    return %c0_i32, %arg0 : i32, i32
  }
  func.func @transform_1(%arg0: i32) -> (i32, i32) {
    %c0_i32 = arith.constant 0 : i32
    %c0_i32_0 = arith.constant 0 : i32
    return %c0_i32, %arg0 : i32, i32
  }
  func.func @transform_2(%arg0: i32) -> (i32, i32) {
    %c0_i32 = arith.constant 0 : i32
    %c0_i32_0 = arith.constant 0 : i32
    %c0_i32_1 = arith.constant 0 : i32
    return %c0_i32, %c0_i32_0 : i32, i32
  }
  func.func @transform_3(%arg0: i32) -> (i32, i32) {
    %c0_i32 = arith.constant 0 : i32
    %c0_i32_0 = arith.constant 0 : i32
    %c0_i32_1 = arith.constant 0 : i32
    return %c0_i32, %c0_i32_0 : i32, i32
  }
  func.func @transform_4(%arg0: i32) -> (i32, i32) {
    %c0_i32 = arith.constant 0 : i32
    %c0_i32_0 = arith.constant 0 : i32
    %c0_i32_1 = arith.constant 0 : i32
    return %c0_i32, %c0_i32_0 : i32, i32
  }
  func.func @transform_5(%arg0: i32) -> (i32, i32) {
    %c0_i32 = arith.constant 0 : i32
    %c0_i32_0 = arith.constant 0 : i32
    return %c0_i32, %arg0 : i32, i32
  }
}

</mosaic_0001>

<llo_original>
// kernel: tpu_custom_call.1
$region0: #{tpu_custom_call.1}
  #allocation0 [shape = 'u32[]', space=smem, size = 0x4, offset = 0x4, fixed_abs, tag = 'smem constant byte address 0x4 - core index']
  #allocation1 [shape = 'u32[144,128]{1,0:T(1,128)}', space=vmem, size = 0x12000, scoped, tag = 'internal scratch']
  #allocation2 [shape = 'f32[1,1]{1,0:T(1,128)S(6)}', space=smem, size = 0x200, scoped, tag = 'scoped memory for tpu_custom_call.1']
  %s0 = inlined_call_operand.hbm [shape: s32[1,512], index: 0, kind: input, shape index: {}]
  %s1 = inlined_call_operand.hbm [shape: s32[1,512], index: 1, kind: input, shape index: {}]
  %s2 = inlined_call_operand.vmem [shape: f32[1,64], index: 2, kind: input, shape index: {}]
  %s3 = inlined_call_operand.vmem [shape: f32[1,128], index: 3, kind: input, shape index: {}]
  %s4 = inlined_call_operand.<no memory space> [shape: f32[1,1], index: 4, kind: input, shape index: {}]
  %s5 = inlined_call_operand.hbm [shape: f32[1,512], index: 5, kind: output, shape index: {}]
  %s6 = sld [smem:[#allocation0]]
  $region38: #{tpu_custom_call.1} parent=0
    _
  %s8 = ssub.s32 1, %s6
  %s9 = scalar_select 0, %s8, %s6
  %10 = sst [smem:[#allocation2]] %s4
  $region1: #{tpu_custom_call.1} parent=0
    #allocation3 [shape = 'u8[2048]{0}', space=vmem, size = 0x800, scoped, tag = 'input window, operand 0, single buffered']
    #allocation4 [shape = 's32[1]{0}', space=sflag, size = 0x4, scoped, tag = 'scoped memory for tpu_custom_call.1']
    #allocation5 [shape = 's32[1]{0}', space=sflag, size = 0x4, scoped, tag = 'scoped memory for tpu_custom_call.1']
    #allocation6 [shape = 'u8[2048]{0}', space=vmem, size = 0x800, scoped, tag = 'input window, operand 1, single buffered']
    #allocation7 [shape = 's32[1]{0}', space=sflag, size = 0x4, scoped, tag = 'scoped memory for tpu_custom_call.1']
    #allocation8 [shape = 'u8[2048]{0}', space=vmem, size = 0x800, scoped, tag = 'output window, operand 0, single buffered']
    %11 = vsyncpa [#allocation4], 0
    %12 = vsyncpa [#allocation7], 0
    %13 = vsyncpa [#allocation5], 0
    // Predicated region
    $region2: #{tpu_custom_call.1} parent=1 // pred_check
      _
    $region3: #{tpu_custom_call.1} parent=1 // pred_check_branch
      %15 = sbr.rel (0) target = $region5
    $region4: #{tpu_custom_call.1} parent=1 // pred_region
      %s17 = ssub.s32 64, 64
      %18 = vsyncadd [#allocation4], %s17
      %s20 = sshll.u32 [#allocation3], 4
      %s21 = int_to_ptr.vmem [resolvable:$true] %s20
      %23 = dma.hbm_to_vmem [thread:$0]  %s0, 64, %s21, [#allocation4]
    $region5: #{tpu_custom_call.1} parent=1 // pred_fallthru
      _
    // Predicated region
    $region6: #{tpu_custom_call.1} parent=1 // pred_check
      _
    $region7: #{tpu_custom_call.1} parent=1 // pred_check_branch
      %25 = sbr.rel (0) target = $region9
    $region8: #{tpu_custom_call.1} parent=1 // pred_region
      %s27 = ssub.s32 64, 64
      %28 = vsyncadd [#allocation7], %s27
      %s30 = sshll.u32 [#allocation6], 4
      %s31 = int_to_ptr.vmem [resolvable:$true] %s30
      %33 = dma.hbm_to_vmem [thread:$0]  %s1, 64, %s31, [#allocation7]
    $region9: #{tpu_custom_call.1} parent=1 // pred_fallthru
      _
    // Predicated region
    $region10: #{tpu_custom_call.1} parent=1 // pred_check
      _
    $region11: #{tpu_custom_call.1} parent=1 // pred_check_branch
      %35 = sbr.rel (0) target = $region13
    $region12: #{tpu_custom_call.1} parent=1 // pred_region
      _
    $region13: #{tpu_custom_call.1} parent=1 // pred_fallthru
      _
    // Predicated region
    $region14: #{tpu_custom_call.1} parent=1 // pred_check
      _
    $region15: #{tpu_custom_call.1} parent=1 // pred_check_branch
      %37 = sbr.rel (0) target = $region17
    $region16: #{tpu_custom_call.1} parent=1 // pred_region
      _
    $region17: #{tpu_custom_call.1} parent=1 // pred_fallthru
      _
    // Predicated region
    $region18: #{tpu_custom_call.1} parent=1 // pred_check
      _
    $region19: #{tpu_custom_call.1} parent=1 // pred_check_branch
      %39 = sbr.rel (0) target = $region21
    $region20: #{tpu_custom_call.1} parent=1 // pred_region
      _
    $region21: #{tpu_custom_call.1} parent=1 // pred_fallthru
      _
    // Predicated region
    $region22: #{tpu_custom_call.1} parent=1 // pred_check
      _
    $region23: #{tpu_custom_call.1} parent=1 // pred_check_branch
      %41 = sbr.rel (0) target = $region25
    $region24: #{tpu_custom_call.1} parent=1 // pred_region
      %42 = dma.done [#allocation4], 64
    $region25: #{tpu_custom_call.1} parent=1 // pred_fallthru
      _
    // Predicated region
    $region26: #{tpu_custom_call.1} parent=1 // pred_check
      _
    $region27: #{tpu_custom_call.1} parent=1 // pred_check_branch
      %44 = sbr.rel (0) target = $region29
    $region28: #{tpu_custom_call.1} parent=1 // pred_region
      %45 = dma.done [#allocation7], 64
    $region29: #{tpu_custom_call.1} parent=1 // pred_fallthru
      _
    %v46 = vlaneseq
    %v47 = vshrl.u32 %v46, 7
    %v48 = vadd.s32 %v47, 8
    %v49 = vadd.s32 %v47, 16
    %v50 = vadd.s32 %v47, 24
    %v51 = vadd.s32 %v47, 32
    %v52 = vadd.s32 %v47, 40
    %v53 = vadd.s32 %v47, 48
    %v54 = vadd.s32 %v47, 56
    %v55 = vld [vmem:[#allocation3] sm:$0xf]
    %v56 = vlaneseq
    %v57 = vshrl.u32 %v56, 7
    %v58 = vsub.s32 0, %v57
    %v59 = vrot.slane %v55, %v58
    %v60 = vlaneseq
    %v61 = vshrl.u32 %v60, 7
    %v62 = vsub.s32 1, %v61
    %v63 = vrot.slane %v55, %v62
    %v64 = vlaneseq
    %v65 = vshrl.u32 %v64, 7
    %v66 = vsub.s32 2, %v65
    %v67 = vrot.slane %v55, %v66
    %v68 = vlaneseq
    %v69 = vshrl.u32 %v68, 7
    %v70 = vsub.s32 3, %v69
    %v71 = vrot.slane %v55, %v70
    %vm72 = vcmp.eq.s32.totalorder %v47, %v59
    %vm73 = vcmp.eq.s32.totalorder %v47, %v63
    %vm74 = vcmp.eq.s32.totalorder %v47, %v67
    %vm75 = vcmp.eq.s32.totalorder %v47, %v71
    %vm76 = vcmp.eq.s32.totalorder %v48, %v59
    %vm77 = vcmp.eq.s32.totalorder %v48, %v63
    %vm78 = vcmp.eq.s32.totalorder %v48, %v67
    %vm79 = vcmp.eq.s32.totalorder %v48, %v71
    %vm80 = vcmp.eq.s32.totalorder %v49, %v59
    %vm81 = vcmp.eq.s32.totalorder %v49, %v63
    %vm82 = vcmp.eq.s32.totalorder %v49, %v67
    %vm83 = vcmp.eq.s32.totalorder %v49, %v71
    %vm84 = vcmp.eq.s32.totalorder %v50, %v59
    %vm85 = vcmp.eq.s32.totalorder %v50, %v63
    %vm86 = vcmp.eq.s32.totalorder %v50, %v67
    %vm87 = vcmp.eq.s32.totalorder %v50, %v71
    %vm88 = vcmp.eq.s32.totalorder %v51, %v59
    %vm89 = vcmp.eq.s32.totalorder %v51, %v63
    %vm90 = vcmp.eq.s32.totalorder %v51, %v67
    %vm91 = vcmp.eq.s32.totalorder %v51, %v71
    %vm92 = vcmp.eq.s32.totalorder %v52, %v59
    %vm93 = vcmp.eq.s32.totalorder %v52, %v63
    %vm94 = vcmp.eq.s32.totalorder %v52, %v67
    %vm95 = vcmp.eq.s32.totalorder %v52, %v71
    %vm96 = vcmp.eq.s32.totalorder %v53, %v59
    %vm97 = vcmp.eq.s32.totalorder %v53, %v63
    %vm98 = vcmp.eq.s32.totalorder %v53, %v67
    %vm99 = vcmp.eq.s32.totalorder %v53, %v71
    %vm100 = vcmp.eq.s32.totalorder %v54, %v59
    %vm101 = vcmp.eq.s32.totalorder %v54, %v63
    %vm102 = vcmp.eq.s32.totalorder %v54, %v67
    %vm103 = vcmp.eq.s32.totalorder %v54, %v71
    %v104 = vsel %vm72, 1, 0
    %v105 = vsel %vm73, 1, 0
    %v106 = vsel %vm74, 1, 0
    %v107 = vsel %vm75, 1, 0
    %v108 = vsel %vm76, 1, 0
    %v109 = vsel %vm77, 1, 0
    %v110 = vsel %vm78, 1, 0
    %v111 = vsel %vm79, 1, 0
    %v112 = vsel %vm80, 1, 0
    %v113 = vsel %vm81, 1, 0
    %v114 = vsel %vm82, 1, 0
    %v115 = vsel %vm83, 1, 0
    %v116 = vsel %vm84, 1, 0
    %v117 = vsel %vm85, 1, 0
    %v118 = vsel %vm86, 1, 0
    %v119 = vsel %vm87, 1, 0
    %v120 = vsel %vm88, 1, 0
    %v121 = vsel %vm89, 1, 0
    %v122 = vsel %vm90, 1, 0
    %v123 = vsel %vm91, 1, 0
    %v124 = vsel %vm92, 1, 0
    %v125 = vsel %vm93, 1, 0
    %v126 = vsel %vm94, 1, 0
    %v127 = vsel %vm95, 1, 0
    %v128 = vsel %vm96, 1, 0
    %v129 = vsel %vm97, 1, 0
    %v130 = vsel %vm98, 1, 0
    %v131 = vsel %vm99, 1, 0
    %v132 = vsel %vm100, 1, 0
    %v133 = vsel %vm101, 1, 0
    %v134 = vsel %vm102, 1, 0
    %v135 = vsel %vm103, 1, 0
    %v136 = vcvt.s32.f32 %v104
    %v137 = vcvt.s32.f32 %v105
    %v138 = vcvt.s32.f32 %v106
    %v139 = vcvt.s32.f32 %v107
    %v140 = vcvt.s32.f32 %v108
    %v141 = vcvt.s32.f32 %v109
    %v142 = vcvt.s32.f32 %v110
    %v143 = vcvt.s32.f32 %v111
    %v144 = vcvt.s32.f32 %v112
    %v145 = vcvt.s32.f32 %v113
    %v146 = vcvt.s32.f32 %v114
    %v147 = vcvt.s32.f32 %v115
    %v148 = vcvt.s32.f32 %v116
    %v149 = vcvt.s32.f32 %v117
    %v150 = vcvt.s32.f32 %v118
    %v151 = vcvt.s32.f32 %v119
    %v152 = vcvt.s32.f32 %v120
    %v153 = vcvt.s32.f32 %v121
    %v154 = vcvt.s32.f32 %v122
    %v155 = vcvt.s32.f32 %v123
    %v156 = vcvt.s32.f32 %v124
    %v157 = vcvt.s32.f32 %v125
    %v158 = vcvt.s32.f32 %v126
    %v159 = vcvt.s32.f32 %v127
    %v160 = vcvt.s32.f32 %v128
    %v161 = vcvt.s32.f32 %v129
    %v162 = vcvt.s32.f32 %v130
    %v163 = vcvt.s32.f32 %v131
    %v164 = vcvt.s32.f32 %v132
    %v165 = vcvt.s32.f32 %v133
    %v166 = vcvt.s32.f32 %v134
    %v167 = vcvt.s32.f32 %v135
    %v168 = vadd.s32 %v47, 64
    %v169 = vadd.s32 %v47, 72
    %v170 = vadd.s32 %v47, 80
    %v171 = vadd.s32 %v47, 88
    %v172 = vadd.s32 %v47, 96
    %v173 = vadd.s32 %v47, 104
    %v174 = vadd.s32 %v47, 112
    %v175 = vadd.s32 %v47, 120
    %v176 = vld [vmem:[#allocation6] sm:$0xf]
    %v177 = vlaneseq
    %v178 = vshrl.u32 %v177, 7
    %v179 = vsub.s32 0, %v178
    %v180 = vrot.slane %v176, %v179
    %v181 = vlaneseq
    %v182 = vshrl.u32 %v181, 7
    %v183 = vsub.s32 1, %v182
    %v184 = vrot.slane %v176, %v183
    %v185 = vlaneseq
    %v186 = vshrl.u32 %v185, 7
    %v187 = vsub.s32 2, %v186
    %v188 = vrot.slane %v176, %v187
    %v189 = vlaneseq
    %v190 = vshrl.u32 %v189, 7
    %v191 = vsub.s32 3, %v190
    %v192 = vrot.slane %v176, %v191
    %vm193 = vcmp.eq.s32.totalorder %v47, %v180
    %vm194 = vcmp.eq.s32.totalorder %v47, %v184
    %vm195 = vcmp.eq.s32.totalorder %v47, %v188
    %vm196 = vcmp.eq.s32.totalorder %v47, %v192
    %vm197 = vcmp.eq.s32.totalorder %v48, %v180
    %vm198 = vcmp.eq.s32.totalorder %v48, %v184
    %vm199 = vcmp.eq.s32.totalorder %v48, %v188
    %vm200 = vcmp.eq.s32.totalorder %v48, %v192
    %vm201 = vcmp.eq.s32.totalorder %v49, %v180
    %vm202 = vcmp.eq.s32.totalorder %v49, %v184
    %vm203 = vcmp.eq.s32.totalorder %v49, %v188
    %vm204 = vcmp.eq.s32.totalorder %v49, %v192
    %vm205 = vcmp.eq.s32.totalorder %v50, %v180
    %vm206 = vcmp.eq.s32.totalorder %v50, %v184
    %vm207 = vcmp.eq.s32.totalorder %v50, %v188
    %vm208 = vcmp.eq.s32.totalorder %v50, %v192
    %vm209 = vcmp.eq.s32.totalorder %v51, %v180
    %vm210 = vcmp.eq.s32.totalorder %v51, %v184
    %vm211 = vcmp.eq.s32.totalorder %v51, %v188
    %vm212 = vcmp.eq.s32.totalorder %v51, %v192
    %vm213 = vcmp.eq.s32.totalorder %v52, %v180
    %vm214 = vcmp.eq.s32.totalorder %v52, %v184
    %vm215 = vcmp.eq.s32.totalorder %v52, %v188
    %vm216 = vcmp.eq.s32.totalorder %v52, %v192
    %vm217 = vcmp.eq.s32.totalorder %v53, %v180
    %vm218 = vcmp.eq.s32.totalorder %v53, %v184
    %vm219 = vcmp.eq.s32.totalorder %v53, %v188
    %vm220 = vcmp.eq.s32.totalorder %v53, %v192
    %vm221 = vcmp.eq.s32.totalorder %v54, %v180
    %vm222 = vcmp.eq.s32.totalorder %v54, %v184
    %vm223 = vcmp.eq.s32.totalorder %v54, %v188
    %vm224 = vcmp.eq.s32.totalorder %v54, %v192
    %vm225 = vcmp.eq.s32.totalorder %v168, %v180
    %vm226 = vcmp.eq.s32.totalorder %v168, %v184
    %vm227 = vcmp.eq.s32.totalorder %v168, %v188
    %vm228 = vcmp.eq.s32.totalorder %v168, %v192
    %vm229 = vcmp.eq.s32.totalorder %v169, %v180
    %vm230 = vcmp.eq.s32.totalorder %v169, %v184
    %vm231 = vcmp.eq.s32.totalorder %v169, %v188
    %vm232 = vcmp.eq.s32.totalorder %v169, %v192
    %vm233 = vcmp.eq.s32.totalorder %v170, %v180
    %vm234 = vcmp.eq.s32.totalorder %v170, %v184
    %vm235 = vcmp.eq.s32.totalorder %v170, %v188
    %vm236 = vcmp.eq.s32.totalorder %v170, %v192
    %vm237 = vcmp.eq.s32.totalorder %v171, %v180
    %vm238 = vcmp.eq.s32.totalorder %v171, %v184
    %vm239 = vcmp.eq.s32.totalorder %v171, %v188
    %vm240 = vcmp.eq.s32.totalorder %v171, %v192
    %vm241 = vcmp.eq.s32.totalorder %v172, %v180
    %vm242 = vcmp.eq.s32.totalorder %v172, %v184
    %vm243 = vcmp.eq.s32.totalorder %v172, %v188
    %vm244 = vcmp.eq.s32.totalorder %v172, %v192
    %vm245 = vcmp.eq.s32.totalorder %v173, %v180
    %vm246 = vcmp.eq.s32.totalorder %v173, %v184
    %vm247 = vcmp.eq.s32.totalorder %v173, %v188
    %vm248 = vcmp.eq.s32.totalorder %v173, %v192
    %vm249 = vcmp.eq.s32.totalorder %v174, %v180
    %vm250 = vcmp.eq.s32.totalorder %v174, %v184
    %vm251 = vcmp.eq.s32.totalorder %v174, %v188
    %vm252 = vcmp.eq.s32.totalorder %v174, %v192
    %vm253 = vcmp.eq.s32.totalorder %v175, %v180
    %vm254 = vcmp.eq.s32.totalorder %v175, %v184
    %vm255 = vcmp.eq.s32.totalorder %v175, %v188
    %vm256 = vcmp.eq.s32.totalorder %v175, %v192
    %v257 = vsel %vm193, 1, 0
    %v258 = vsel %vm194, 1, 0
    %v259 = vsel %vm195, 1, 0
    %v260 = vsel %vm196, 1, 0
    %v261 = vsel %vm197, 1, 0
    %v262 = vsel %vm198, 1, 0
    %v263 = vsel %vm199, 1, 0
    %v264 = vsel %vm200, 1, 0
    %v265 = vsel %vm201, 1, 0
    %v266 = vsel %vm202, 1, 0
    %v267 = vsel %vm203, 1, 0
    %v268 = vsel %vm204, 1, 0
    %v269 = vsel %vm205, 1, 0
    %v270 = vsel %vm206, 1, 0
    %v271 = vsel %vm207, 1, 0
    %v272 = vsel %vm208, 1, 0
    %v273 = vsel %vm209, 1, 0
    %v274 = vsel %vm210, 1, 0
    %v275 = vsel %vm211, 1, 0
    %v276 = vsel %vm212, 1, 0
    %v277 = vsel %vm213, 1, 0
    %v278 = vsel %vm214, 1, 0
    %v279 = vsel %vm215, 1, 0
    %v280 = vsel %vm216, 1, 0
    %v281 = vsel %vm217, 1, 0
    %v282 = vsel %vm218, 1, 0
    %v283 = vsel %vm219, 1, 0
    %v284 = vsel %vm220, 1, 0
    %v285 = vsel %vm221, 1, 0
    %v286 = vsel %vm222, 1, 0
    %v287 = vsel %vm223, 1, 0
    %v288 = vsel %vm224, 1, 0
    %v289 = vsel %vm225, 1, 0
    %v290 = vsel %vm226, 1, 0
    %v291 = vsel %vm227, 1, 0
    %v292 = vsel %vm228, 1, 0
    %v293 = vsel %vm229, 1, 0
    %v294 = vsel %vm230, 1, 0
    %v295 = vsel %vm231, 1, 0
    %v296 = vsel %vm232, 1, 0
    %v297 = vsel %vm233, 1, 0
    %v298 = vsel %vm234, 1, 0
    %v299 = vsel %vm235, 1, 0
    %v300 = vsel %vm236, 1, 0
    %v301 = vsel %vm237, 1, 0
    %v302 = vsel %vm238, 1, 0
    %v303 = vsel %vm239, 1, 0
    %v304 = vsel %vm240, 1, 0
    %v305 = vsel %vm241, 1, 0
    %v306 = vsel %vm242, 1, 0
    %v307 = vsel %vm243, 1, 0
    %v308 = vsel %vm244, 1, 0
    %v309 = vsel %vm245, 1, 0
    %v310 = vsel %vm246, 1, 0
    %v311 = vsel %vm247, 1, 0
    %v312 = vsel %vm248, 1, 0
    %v313 = vsel %vm249, 1, 0
    %v314 = vsel %vm250, 1, 0
    %v315 = vsel %vm251, 1, 0
    %v316 = vsel %vm252, 1, 0
    %v317 = vsel %vm253, 1, 0
    %v318 = vsel %vm254, 1, 0
    %v319 = vsel %vm255, 1, 0
    %v320 = vsel %vm256, 1, 0
    %v321 = vcvt.s32.f32 %v257
    %v322 = vcvt.s32.f32 %v258
    %v323 = vcvt.s32.f32 %v259
    %v324 = vcvt.s32.f32 %v260
    %v325 = vcvt.s32.f32 %v261
    %v326 = vcvt.s32.f32 %v262
    %v327 = vcvt.s32.f32 %v263
    %v328 = vcvt.s32.f32 %v264
    %v329 = vcvt.s32.f32 %v265
    %v330 = vcvt.s32.f32 %v266
    %v331 = vcvt.s32.f32 %v267
    %v332 = vcvt.s32.f32 %v268
    %v333 = vcvt.s32.f32 %v269
    %v334 = vcvt.s32.f32 %v270
    %v335 = vcvt.s32.f32 %v271
    %v336 = vcvt.s32.f32 %v272
    %v337 = vcvt.s32.f32 %v273
    %v338 = vcvt.s32.f32 %v274
    %v339 = vcvt.s32.f32 %v275
    %v340 = vcvt.s32.f32 %v276
    %v341 = vcvt.s32.f32 %v277
    %v342 = vcvt.s32.f32 %v278
    %v343 = vcvt.s32.f32 %v279
    %v344 = vcvt.s32.f32 %v280
    %v345 = vcvt.s32.f32 %v281
    %v346 = vcvt.s32.f32 %v282
    %v347 = vcvt.s32.f32 %v283
    %v348 = vcvt.s32.f32 %v284
    %v349 = vcvt.s32.f32 %v285
    %v350 = vcvt.s32.f32 %v286
    %v351 = vcvt.s32.f32 %v287
    %v352 = vcvt.s32.f32 %v288
    %v353 = vcvt.s32.f32 %v289
    %v354 = vcvt.s32.f32 %v290
    %v355 = vcvt.s32.f32 %v291
    %v356 = vcvt.s32.f32 %v292
    %v357 = vcvt.s32.f32 %v293
    %v358 = vcvt.s32.f32 %v294
    %v359 = vcvt.s32.f32 %v295
    %v360 = vcvt.s32.f32 %v296
    %v361 = vcvt.s32.f32 %v297
    %v362 = vcvt.s32.f32 %v298
    %v363 = vcvt.s32.f32 %v299
    %v364 = vcvt.s32.f32 %v300
    %v365 = vcvt.s32.f32 %v301
    %v366 = vcvt.s32.f32 %v302
    %v367 = vcvt.s32.f32 %v303
    %v368 = vcvt.s32.f32 %v304
    %v369 = vcvt.s32.f32 %v305
    %v370 = vcvt.s32.f32 %v306
    %v371 = vcvt.s32.f32 %v307
    %v372 = vcvt.s32.f32 %v308
    %v373 = vcvt.s32.f32 %v309
    %v374 = vcvt.s32.f32 %v310
    %v375 = vcvt.s32.f32 %v311
    %v376 = vcvt.s32.f32 %v312
    %v377 = vcvt.s32.f32 %v313
    %v378 = vcvt.s32.f32 %v314
    %v379 = vcvt.s32.f32 %v315
    %v380 = vcvt.s32.f32 %v316
    %v381 = vcvt.s32.f32 %v317
    %v382 = vcvt.s32.f32 %v318
    %v383 = vcvt.s32.f32 %v319
    %v384 = vcvt.s32.f32 %v320
    %v385 = vld [vmem:[%s2] sm:$0x1]
    %v386 = vld [vmem:[%s3] sm:$0x1]
    %387 = vmatprep.subr.mxu0 %v382
    %388 = vmatpush1.msra.mxu0 %v381
    %389 = vmatprep.subr.mxu0 %v378
    %390 = vmatpush1.msra.mxu0 %v377
    %391 = vmatprep.subr.mxu0 %v374
    %392 = vmatpush1.msra.mxu0 %v373
    %393 = vmatprep.subr.mxu0 %v370
    %394 = vmatpush1.msra.mxu0 %v369
    %395 = vmatprep.subr.mxu0 %v366
    %396 = vmatpush1.msra.mxu0 %v365
    %397 = vmatprep.subr.mxu0 %v362
    %398 = vmatpush1.msra.mxu0 %v361
    %399 = vmatprep.subr.mxu0 %v358
    %400 = vmatpush1.msra.mxu0 %v357
    %401 = vmatprep.subr.mxu0 %v354
    %402 = vmatpush1.msra.mxu0 %v353
    %403 = vmatprep.subr.mxu0 %v350
    %404 = vmatpush1.msra.mxu0 %v349
    %405 = vmatprep.subr.mxu0 %v346
    %406 = vmatpush1.msra.mxu0 %v345
    %407 = vmatprep.subr.mxu0 %v342
    %408 = vmatpush1.msra.mxu0 %v341
    %409 = vmatprep.subr.mxu0 %v338
    %410 = vmatpush1.msra.mxu0 %v337
    %411 = vmatprep.subr.mxu0 %v334
    %412 = vmatpush1.msra.mxu0 %v333
    %413 = vmatprep.subr.mxu0 %v330
    %414 = vmatpush1.msra.mxu0 %v329
    %415 = vmatprep.subr.mxu0 %v326
    %416 = vmatpush1.msra.mxu0 %v325
    %417 = vmatprep.subr.mxu0 %v322
    %418 = vmatpush1.msra.mxu0 %v321
    %419 = vmatprep.subr.mxu0 0.0
    %420 = vmatpush2.msra.mxu0 0.0
    %421 = vmatprep.subr.mxu0 0.0
    %422 = vmatpush2.msra.mxu0 0.0
    %423 = vmatprep.subr.mxu0 0.0
    %424 = vmatpush2.msra.mxu0 0.0
    %425 = vmatprep.subr.mxu0 0.0
    %426 = vmatpush2.msra.mxu0 0.0
    %427 = vmatprep.subr.mxu0 0.0
    %428 = vmatpush2.msra.mxu0 0.0
    %429 = vmatprep.subr.mxu0 0.0
    %430 = vmatpush2.msra.mxu0 0.0
    %431 = vmatprep.subr.mxu0 0.0
    %432 = vmatpush2.msra.mxu0 0.0
    %433 = vmatprep.subr.mxu0 0.0
    %434 = vmatpush2.msra.mxu0 0.0
    %435 = vmatprep.subr.mxu0 0.0
    %436 = vmatpush2.msra.mxu0 0.0
    %437 = vmatprep.subr.mxu0 0.0
    %438 = vmatpush2.msra.mxu0 0.0
    %439 = vmatprep.subr.mxu0 0.0
    %440 = vmatpush2.msra.mxu0 0.0
    %441 = vmatprep.subr.mxu0 0.0
    %442 = vmatpush2.msra.mxu0 0.0
    %443 = vmatprep.subr.mxu0 0.0
    %444 = vmatpush2.msra.mxu0 0.0
    %445 = vmatprep.subr.mxu0 0.0
    %446 = vmatpush2.msra.mxu0 0.0
    %447 = vmatprep.subr.mxu0 0.0
    %448 = vmatpush2.msra.mxu0 0.0
    %449 = vmatprep.subr.mxu0 0.0
    %450 = vmatpush2.msra.mxu0 0.0
    %451 = vmatprep.mubr.f32.mxu0 0.0
    %452 = vmatmul.mubr.f32.gmra.mxu0 %v386
    %v453 = vpop.f32.mrf.mxu0
    %v454 = vadd.f32 0.0, %v453
    %v455 = vpop.f32.mrf.mxu0
    %v456 = vadd.f32 0.0, %v455
    %457 = vdwg.mxu0
    %458 = vmatprep.subr.mxu0 %v384
    %459 = vmatpush1.msra.mxu0 %v383
    %460 = vmatprep.subr.mxu0 %v380
    %461 = vmatpush1.msra.mxu0 %v379
    %462 = vmatprep.subr.mxu0 %v376
    %463 = vmatpush1.msra.mxu0 %v375
    %464 = vmatprep.subr.mxu0 %v372
    %465 = vmatpush1.msra.mxu0 %v371
    %466 = vmatprep.subr.mxu0 %v368
    %467 = vmatpush1.msra.mxu0 %v367
    %468 = vmatprep.subr.mxu0 %v364
    %469 = vmatpush1.msra.mxu0 %v363
    %470 = vmatprep.subr.mxu0 %v360
    %471 = vmatpush1.msra.mxu0 %v359
    %472 = vmatprep.subr.mxu0 %v356
    %473 = vmatpush1.msra.mxu0 %v355
    %474 = vmatprep.subr.mxu0 %v352
    %475 = vmatpush1.msra.mxu0 %v351
    %476 = vmatprep.subr.mxu0 %v348
    %477 = vmatpush1.msra.mxu0 %v347
    %478 = vmatprep.subr.mxu0 %v344
    %479 = vmatpush1.msra.mxu0 %v343
    %480 = vmatprep.subr.mxu0 %v340
    %481 = vmatpush1.msra.mxu0 %v339
    %482 = vmatprep.subr.mxu0 %v336
    %483 = vmatpush1.msra.mxu0 %v335
    %484 = vmatprep.subr.mxu0 %v332
    %485 = vmatpush1.msra.mxu0 %v331
    %486 = vmatprep.subr.mxu0 %v328
    %487 = vmatpush1.msra.mxu0 %v327
    %488 = vmatprep.subr.mxu0 %v324
    %489 = vmatpush1.msra.mxu0 %v323
    %490 = vmatprep.subr.mxu0 0.0
    %491 = vmatpush2.msra.mxu0 0.0
    %492 = vmatprep.subr.mxu0 0.0
    %493 = vmatpush2.msra.mxu0 0.0
    %494 = vmatprep.subr.mxu0 0.0
    %495 = vmatpush2.msra.mxu0 0.0
    %496 = vmatprep.subr.mxu0 0.0
    %497 = vmatpush2.msra.mxu0 0.0
    %498 = vmatprep.subr.mxu0 0.0
    %499 = vmatpush2.msra.mxu0 0.0
    %500 = vmatprep.subr.mxu0 0.0
    %501 = vmatpush2.msra.mxu0 0.0
    %502 = vmatprep.subr.mxu0 0.0
    %503 = vmatpush2.msra.mxu0 0.0
    %504 = vmatprep.subr.mxu0 0.0
    %505 = vmatpush2.msra.mxu0 0.0
    %506 = vmatprep.subr.mxu0 0.0
    %507 = vmatpush2.msra.mxu0 0.0
    %508 = vmatprep.subr.mxu0 0.0
    %509 = vmatpush2.msra.mxu0 0.0
    %510 = vmatprep.subr.mxu0 0.0
    %511 = vmatpush2.msra.mxu0 0.0
    %512 = vmatprep.subr.mxu0 0.0
    %513 = vmatpush2.msra.mxu0 0.0
    %514 = vmatprep.subr.mxu0 0.0
    %515 = vmatpush2.msra.mxu0 0.0
    %516 = vmatprep.subr.mxu0 0.0
    %517 = vmatpush2.msra.mxu0 0.0
    %518 = vmatprep.subr.mxu0 0.0
    %519 = vmatpush2.msra.mxu0 0.0
    %520 = vmatprep.subr.mxu0 0.0
    %521 = vmatpush2.msra.mxu0 0.0
    %522 = vmatprep.mubr.f32.mxu0 0.0
    %523 = vmatmul.mubr.f32.gmra.mxu0 %v386
    %v524 = vpop.f32.mrf.mxu0
    %v525 = vadd.f32 0.0, %v524
    %v526 = vpop.f32.mrf.mxu0
    %v527 = vadd.f32 0.0, %v526
    %528 = vdwg.mxu0
    %vm529 = vcmask 523264
    %v531 = vsel %vm529, %v385, 0
    %533 = vmatprep.subr.mxu0 0.0
    %534 = vmatpush1.msra.mxu0 0.0
    %535 = vmatprep.subr.mxu0 0.0
    %536 = vmatpush1.msra.mxu0 0.0
    %537 = vmatprep.subr.mxu0 0.0
    %538 = vmatpush1.msra.mxu0 0.0
    %539 = vmatprep.subr.mxu0 0.0
    %540 = vmatpush1.msra.mxu0 0.0
    %541 = vmatprep.subr.mxu0 0.0
    %542 = vmatpush1.msra.mxu0 0.0
    %543 = vmatprep.subr.mxu0 0.0
    %544 = vmatpush1.msra.mxu0 0.0
    %545 = vmatprep.subr.mxu0 0.0
    %546 = vmatpush1.msra.mxu0 0.0
    %547 = vmatprep.subr.mxu0 0.0
    %548 = vmatpush1.msra.mxu0 0.0
    %549 = vmatprep.subr.mxu0 %v165
    %550 = vmatpush1.msra.mxu0 %v164
    %551 = vmatprep.subr.mxu0 %v161
    %552 = vmatpush1.msra.mxu0 %v160
    %553 = vmatprep.subr.mxu0 %v157
    %554 = vmatpush1.msra.mxu0 %v156
    %555 = vmatprep.subr.mxu0 %v153
    %556 = vmatpush1.msra.mxu0 %v152
    %557 = vmatprep.subr.mxu0 %v149
    %558 = vmatpush1.msra.mxu0 %v148
    %559 = vmatprep.subr.mxu0 %v145
    %560 = vmatpush1.msra.mxu0 %v144
    %561 = vmatprep.subr.mxu0 %v141
    %562 = vmatpush1.msra.mxu0 %v140
    %563 = vmatprep.subr.mxu0 %v137
    %564 = vmatpush1.msra.mxu0 %v136
    %565 = vmatprep.subr.mxu0 0.0
    %566 = vmatpush2.msra.mxu0 0.0
    %567 = vmatprep.subr.mxu0 0.0
    %568 = vmatpush2.msra.mxu0 0.0
    %569 = vmatprep.subr.mxu0 0.0
    %570 = vmatpush2.msra.mxu0 0.0
    %571 = vmatprep.subr.mxu0 0.0
    %572 = vmatpush2.msra.mxu0 0.0
    %573 = vmatprep.subr.mxu0 0.0
    %574 = vmatpush2.msra.mxu0 0.0
    %575 = vmatprep.subr.mxu0 0.0
    %576 = vmatpush2.msra.mxu0 0.0
    %577 = vmatprep.subr.mxu0 0.0
    %578 = vmatpush2.msra.mxu0 0.0
    %579 = vmatprep.subr.mxu0 0.0
    %580 = vmatpush2.msra.mxu0 0.0
    %581 = vmatprep.subr.mxu0 0.0
    %582 = vmatpush2.msra.mxu0 0.0
    %583 = vmatprep.subr.mxu0 0.0
    %584 = vmatpush2.msra.mxu0 0.0
    %585 = vmatprep.subr.mxu0 0.0
    %586 = vmatpush2.msra.mxu0 0.0
    %587 = vmatprep.subr.mxu0 0.0
    %588 = vmatpush2.msra.mxu0 0.0
    %589 = vmatprep.subr.mxu0 0.0
    %590 = vmatpush2.msra.mxu0 0.0
    %591 = vmatprep.subr.mxu0 0.0
    %592 = vmatpush2.msra.mxu0 0.0
    %593 = vmatprep.subr.mxu0 0.0
    %594 = vmatpush2.msra.mxu0 0.0
    %595 = vmatprep.subr.mxu0 0.0
    %596 = vmatpush2.msra.mxu0 0.0
    %597 = vmatprep.mubr.f32.mxu0 0.0
    %598 = vmatmul.mubr.f32.gmra.mxu0 %v531
    %v599 = vpop.f32.mrf.mxu0
    %v600 = vadd.f32 %v454, %v599
    %v601 = vpop.f32.mrf.mxu0
    %v602 = vadd.f32 %v456, %v601
    %603 = vdwg.mxu0
    %604 = vmatprep.subr.mxu0 0.0
    %605 = vmatpush1.msra.mxu0 0.0
    %606 = vmatprep.subr.mxu0 0.0
    %607 = vmatpush1.msra.mxu0 0.0
    %608 = vmatprep.subr.mxu0 0.0
    %609 = vmatpush1.msra.mxu0 0.0
    %610 = vmatprep.subr.mxu0 0.0
    %611 = vmatpush1.msra.mxu0 0.0
    %612 = vmatprep.subr.mxu0 0.0
    %613 = vmatpush1.msra.mxu0 0.0
    %614 = vmatprep.subr.mxu0 0.0
    %615 = vmatpush1.msra.mxu0 0.0
    %616 = vmatprep.subr.mxu0 0.0
    %617 = vmatpush1.msra.mxu0 0.0
    %618 = vmatprep.subr.mxu0 0.0
    %619 = vmatpush1.msra.mxu0 0.0
    %620 = vmatprep.subr.mxu0 %v167
    %621 = vmatpush1.msra.mxu0 %v166
    %622 = vmatprep.subr.mxu0 %v163
    %623 = vmatpush1.msra.mxu0 %v162
    %624 = vmatprep.subr.mxu0 %v159
    %625 = vmatpush1.msra.mxu0 %v158
    %626 = vmatprep.subr.mxu0 %v155
    %627 = vmatpush1.msra.mxu0 %v154
    %628 = vmatprep.subr.mxu0 %v151
    %629 = vmatpush1.msra.mxu0 %v150
    %630 = vmatprep.subr.mxu0 %v147
    %631 = vmatpush1.msra.mxu0 %v146
    %632 = vmatprep.subr.mxu0 %v143
    %633 = vmatpush1.msra.mxu0 %v142
    %634 = vmatprep.subr.mxu0 %v139
    %635 = vmatpush1.msra.mxu0 %v138
    %636 = vmatprep.subr.mxu0 0.0
    %637 = vmatpush2.msra.mxu0 0.0
    %638 = vmatprep.subr.mxu0 0.0
    %639 = vmatpush2.msra.mxu0 0.0
    %640 = vmatprep.subr.mxu0 0.0
    %641 = vmatpush2.msra.mxu0 0.0
    %642 = vmatprep.subr.mxu0 0.0
    %643 = vmatpush2.msra.mxu0 0.0
    %644 = vmatprep.subr.mxu0 0.0
    %645 = vmatpush2.msra.mxu0 0.0
    %646 = vmatprep.subr.mxu0 0.0
    %647 = vmatpush2.msra.mxu0 0.0
    %648 = vmatprep.subr.mxu0 0.0
    %649 = vmatpush2.msra.mxu0 0.0
    %650 = vmatprep.subr.mxu0 0.0
    %651 = vmatpush2.msra.mxu0 0.0
    %652 = vmatprep.subr.mxu0 0.0
    %653 = vmatpush2.msra.mxu0 0.0
    %654 = vmatprep.subr.mxu0 0.0
    %655 = vmatpush2.msra.mxu0 0.0
    %656 = vmatprep.subr.mxu0 0.0
    %657 = vmatpush2.msra.mxu0 0.0
    %658 = vmatprep.subr.mxu0 0.0
    %659 = vmatpush2.msra.mxu0 0.0
    %660 = vmatprep.subr.mxu0 0.0
    %661 = vmatpush2.msra.mxu0 0.0
    %662 = vmatprep.subr.mxu0 0.0
    %663 = vmatpush2.msra.mxu0 0.0
    %664 = vmatprep.subr.mxu0 0.0
    %665 = vmatpush2.msra.mxu0 0.0
    %666 = vmatprep.subr.mxu0 0.0
    %667 = vmatpush2.msra.mxu0 0.0
    %668 = vmatprep.mubr.f32.mxu0 0.0
    %669 = vmatmul.mubr.f32.gmra.mxu0 %v531
    %v670 = vpop.f32.mrf.mxu0
    %v671 = vadd.f32 %v525, %v670
    %v672 = vpop.f32.mrf.mxu0
    %v673 = vadd.f32 %v527, %v672
    %674 = vdwg.mxu0
    %s675 = sld [smem:[#allocation2]]
    %v676 = vstv %s675
    %v677 = vadd.f32 %v600, %v676
    %v678 = vadd.f32 %v602, %v676
    %v679 = vadd.f32 %v671, %v676
    %v680 = vadd.f32 %v673, %v676
    %v685 = vcombine.low %v677, %v678
    %v686 = vcombine.low %v679, %v680
    %v688 = vunpack.c.l.s4 1966171168
    %v689 = vunpack.c.0.s8 %v688
    %v690 = vlaneseq
    %v691 = vshrl.u32 %v690, 7
    %v692 = vsub.s32 %v689, %v691
    %v693 = vrot.slane %v685, %v692
    %v695 = vunpack.c.l.s4 1966171168
    %v696 = vunpack.c.0.s8 %v695
    %v697 = vlaneseq
    %v698 = vshrl.u32 %v697, 7
    %v699 = vsub.s32 %v696, %v698
    %v700 = vrot.slane %v686, %v699
    %v701 = vcombine.low %v693, %v700
    %v703 = vunpack.c.l.s4 1966171168
    %v704 = vunpack.c.0.s8 %v703
    %v705 = vlaneseq
    %v706 = vshrl.u32 %v705, 7
    %v707 = vsub.s32 %v704, %v706
    %v708 = vrot.slane %v701, %v707
    %v710 = vlaneseq
    %vm711 = vcmp.ge.s32.totalorder %v710, 0
    %vm712 = vcmp.lt.s32.totalorder %v710, 512
    %vm713 = vmand %vm711, %vm712
    %714 = vst.msk [vmem:[#allocation8] sm:$0xf] %vm713, %v708
    // Predicated region
    $region30: #{tpu_custom_call.1} parent=1 // pred_check
      _
    $region31: #{tpu_custom_call.1} parent=1 // pred_check_branch
      %716 = sbr.rel (0) target = $region33
    $region32: #{tpu_custom_call.1} parent=1 // pred_region
      %s718 = ssub.s32 64, 64
      %719 = vsyncadd [#allocation5], %s718
      %s721 = sshll.u32 [#allocation8], 4
      %s722 = int_to_ptr.vmem [resolvable:$true] %s721
      %724 = dma.vmem_to_hbm [thread:$0]  %s722, 64, %s5, [#allocation5]
    $region33: #{tpu_custom_call.1} parent=1 // pred_fallthru
      _
    // Predicated region
    $region34: #{tpu_custom_call.1} parent=1 // pred_check
      _
    $region35: #{tpu_custom_call.1} parent=1 // pred_check_branch
      %726 = sbr.rel (0) target = $region37
    $region36: #{tpu_custom_call.1} parent=1 // pred_region
      %727 = dma.done [#allocation5], 64
    $region37: #{tpu_custom_call.1} parent=1 // pred_fallthru
      _
    %728 = vsyncpa [#allocation4], 1
    %729 = vsyncpa [#allocation7], 1
    %730 = vsyncpa [#allocation5], 1

</llo_original>
